<compile_context>
chip_gen: v5e
topology: v5e:2x2
jax: 0.10.0
libtpu: 0.0.40
codegen_flags: <defaults>
</compile_context>

<pallas_src>
import functools

import jax
import jax.numpy as jnp
from jax import lax
from jax.experimental import pallas as pl
from jax.experimental.pallas import tpu as pltpu

# config values that in PyTorch come from cfg.MODEL.RELATION_MASK.*
NORM = 2        # 1 -> channel-weight norm, 2 -> cross-channel L2 norm, else -> none
PRENORM = True  # divide each instance feature map by its global L2 norm
TOPK = 100      # note: `topk` is computed but never used in the reference forward()


def _round_up(v, m):
    return ((v + m - 1) // m) * m


def _vmem_capacity_bytes():
    # Generation-aware budgets (review): 128 MiB on v5e/v6e, 64 MiB on v7x.
    try:
        return int(pltpu.get_tpu_info().vmem_capacity_bytes)
    except Exception:
        return 64 * 1024 * 1024  # conservative (v7x-sized) fallback


def _plan_tiles(n, c, hw, x_itemsize, vmem_cap):
    """Pick the channel tile so the larger of the two pallas_calls fits the
    per-generation VMEM budget; minimize channel padding (no divisor-of-C rule)."""
    hwp = _round_up(hw, 128)            # lane-dense last dim: unmasked vst (review)
    budget = int(vmem_cap * 0.70)       # headroom for compiler temporaries / spills
    small = 8 * n * n * 4               # s / w / g2 / softmax working set (generous)

    def fits(ct):
        nc_ = -(-c // ct)
        c_pad_ = nc_ * ct
        xblk = n * ct * hwp * x_itemsize
        reduce_call = 2 * xblk + c_pad_ * n * n * 4 + ct * n * n * 4 + small
        apply_call = 4 * xblk + n * n * 4 + small   # x + out blocks, double-buffered
        return max(reduce_call, apply_call) <= budget

    c_tile = 1
    for cand in range(1, c + 1):
        if fits(cand):
            c_tile = cand
    nc = -(-c // c_tile)
    c_tile = -(-c // nc)                # rebalance so channel padding is minimal
    c_pad = nc * c_tile

    xblk = n * c_tile * hwp * x_itemsize
    est = max(2 * xblk + c_pad * n * n * 4 + c_tile * n * n * 4 + small,
              4 * xblk + n * n * 4 + small)
    vmem_limit = int(min(vmem_cap * 0.9, max(32 * 1024 * 1024, est + (16 << 20))))
    return c_tile, nc, c_pad, hwp, vmem_limit


def _reduce_kernel(x_ref, attn_ref, gram_ref, sumsq_ref, g2_ref, *,
                   norm, prenorm, c_true, c_tile, nc, n, hwp, mm_dtype):
    """Per-channel grams (MXU), cross-channel reductions, and the (n, n) attention.

    x_ref    : (n, c_tile*hwp) block of x in (instance, channel*pixel) layout
    attn_ref : (n, n) output, written once at the last grid step
    gram_ref : (c_pad, n, n) VMEM cache of per-channel gram matrices
    sumsq_ref: (n, 1) running per-instance sum of squares (prenorm)
    g2_ref   : (n, n) running sum over channels of gram^2 (norm == 2)
    """
    ci = pl.program_id(0)

    @pl.when(ci == 0)
    def _init():
        sumsq_ref[...] = jnp.zeros_like(sumsq_ref)
        g2_ref[...] = jnp.zeros_like(g2_ref)

    def channel_step(k):
        off = k * hwp if isinstance(k, int) else pl.multiple_of(k * hwp, 128)
        xc = x_ref[:, pl.ds(off, hwp)]                               # (n, hwp)
        if prenorm:
            xf = xc.astype(jnp.float32)
            sumsq_ref[...] += jnp.sum(xf * xf, axis=1, keepdims=True)
        xm = xc.astype(mm_dtype)
        g = lax.dot_general(xm, xm, (((1,), (1,)), ((), ())),
                            preferred_element_type=jnp.float32)      # Xc @ Xc^T
        gram_ref[ci * c_tile + k] = g
        if norm == 2:
            g2_ref[...] += g * g

    if c_tile <= 32:
        for k in range(c_tile):          # short static unroll (LLO visibility)
            channel_step(k)
    else:
        def _body(k, carry):
            channel_step(k)
            return carry
        lax.fori_loop(0, c_tile, _body, 0)

    @pl.when(ci == nc - 1)
    def _finalize():
        # s[i, j] = 1 / (normf_i * normf_j): hoisted prenorm factor of the energy.
        if prenorm:
            inv_col = lax.rsqrt(sumsq_ref[...])                      # (n, 1)
            s = lax.dot_general(inv_col, inv_col, (((1,), (1,)), ((), ())),
                                preferred_element_type=jnp.float32)  # outer product
        else:
            s = jnp.ones((n, n), dtype=jnp.float32)

        if norm == 2:
            # energy/(sqrt(sum_c energy^2)+eps) == gram * [s / (sqrt(sum_c gram^2)*s + eps)]
            w = s / (jnp.sqrt(g2_ref[...]) * s + 1e-10)
        else:
            w = s

        if norm == 1:
            def _cwmax(b, m):
                g = gram_ref[pl.ds(b * c_tile, c_tile)]
                t = jnp.sum(g * w[None], axis=(1, 2), keepdims=True)
                return jnp.maximum(m, jnp.max(jnp.abs(t)))
            cw_max = lax.fori_loop(0, nc, _cwmax, jnp.float32(0.0))
            inv_cw_max = 1.0 / cw_max
        else:
            inv_cw_max = None

        def _acc(b, carry):
            rmax, nsum = carry
            g = gram_ref[pl.ds(b * c_tile, c_tile)]                  # (c_tile, n, n)
            ne = g * w[None]
            if norm == 1:
                t = jnp.sum(ne, axis=(1, 2), keepdims=True)          # (c_tile, 1, 1)
                ne = ne * (jnp.abs(t) * inv_cw_max)
            rmax = rmax + jnp.sum(jnp.max(ne, axis=2, keepdims=True), axis=0)
            nsum = nsum + jnp.sum(ne, axis=0)
            return rmax, nsum

        rmax, nsum = lax.fori_loop(
            0, nc, _acc,
            (jnp.zeros((n, 1), jnp.float32), jnp.zeros((n, n), jnp.float32)))

        # mean_c(rowmax_c - norm_energy_c), then a row softmax (exact divide: this
        # is a one-shot (n, n) op, not on the hot path, so approx reciprocal buys
        # nothing and costs accuracy).
        logits = (rmax - nsum) * (1.0 / c_true)
        m = jnp.max(logits, axis=-1, keepdims=True)
        e = jnp.exp(logits - m)
        attn_ref[...] = (e / jnp.sum(e, axis=-1, keepdims=True)).astype(attn_ref.dtype)


def _apply_kernel(attn_ref, x_ref, o_ref, *, mm_dtype):
    """out = (gamma*attn) @ x + x, one lane-dense channel chunk per grid step."""
    xb = x_ref[...]                                                  # (n, c_tile*hwp)
    y = jnp.dot(attn_ref[...].astype(mm_dtype), xb.astype(mm_dtype),
                preferred_element_type=jnp.float32)
    o_ref[...] = (y + xb.astype(jnp.float32)).astype(o_ref.dtype)


def ciam_forward(x, gamma, *, norm=NORM, prenorm=PRENORM,
                 matmul_dtype=jnp.bfloat16):
    """CIAM forward.  matmul_dtype=bf16 uses the native MXU path (f32 accumulate);
    pass jnp.float32 for a bit-closer match against an f32 reference.  The residual
    always uses the original-precision x."""
    n, C, H, W = x.shape
    hw = H * W
    # NOTE: `topk` in the PyTorch module is computed but never used in forward().

    vmem_cap = _vmem_capacity_bytes()
    c_tile, nc, c_pad, hwp, vmem_limit = _plan_tiles(
        n, C, hw, x.dtype.itemsize, vmem_cap)
    blk = c_tile * hwp

    # (n, C, HW) layout end-to-end: free views, no wrapper transposes (review).
    x3 = x.reshape(n, C, hw)
    if c_pad != C or hwp != hw:
        x3 = jnp.pad(x3, ((0, 0), (0, c_pad - C), (0, hwp - hw)))
    x2 = x3.reshape(n, c_pad * hwp)

    reduce_kernel = functools.partial(
        _reduce_kernel, norm=norm, prenorm=prenorm, c_true=C, c_tile=c_tile,
        nc=nc, n=n, hwp=hwp, mm_dtype=matmul_dtype)

    attn = pl.pallas_call(
        reduce_kernel,
        out_shape=jax.ShapeDtypeStruct((n, n), jnp.float32),
        grid=(nc,),
        in_specs=[pl.BlockSpec((n, blk), lambda c: (0, c))],
        out_specs=pl.BlockSpec((n, n), lambda c: (0, 0)),
        scratch_shapes=[
            pltpu.VMEM((c_pad, n, n), jnp.float32),   # per-channel gram cache
            pltpu.VMEM((n, 1), jnp.float32),          # per-instance sum of squares
            pltpu.VMEM((n, n), jnp.float32),          # sum_c gram^2 (norm == 2)
        ],
        compiler_params=pltpu.CompilerParams(
            dimension_semantics=("arbitrary",),
            vmem_limit_bytes=vmem_limit),
        cost_estimate=pl.CostEstimate(
            flops=2 * c_pad * n * n * hwp,
            transcendentals=n * n,
            bytes_accessed=n * c_pad * hwp * x.dtype.itemsize + n * n * 4),
    )(x2)

    # Fold gamma into the tiny (n, n) attention: out = (gamma*attn) @ x + x.
    # This removes every scalar input from the kernels.
    attn_scaled = attn * jnp.asarray(gamma, jnp.float32).reshape(())

    apply_kernel = functools.partial(_apply_kernel, mm_dtype=matmul_dtype)
    out2 = pl.pallas_call(
        apply_kernel,
        out_shape=jax.ShapeDtypeStruct((n, c_pad * hwp), x.dtype),
        grid=(nc,),
        in_specs=[pl.BlockSpec((n, n), lambda c: (0, 0)),
                  pl.BlockSpec((n, blk), lambda c: (0, c))],
        out_specs=pl.BlockSpec((n, blk), lambda c: (0, c)),
        compiler_params=pltpu.CompilerParams(
            dimension_semantics=("parallel",),     # megacore-shard the HBM-bound pass
            vmem_limit_bytes=vmem_limit),
        cost_estimate=pl.CostEstimate(
            flops=2 * c_pad * n * n * hwp,
            transcendentals=0,
            bytes_accessed=2 * n * c_pad * hwp * x.dtype.itemsize + n * n * 4),
    )(attn_scaled, x2)

    out = out2.reshape(n, c_pad, hwp)[:, :C, :hw].reshape(n, C, H, W)
    return out


def ciam_reference(x, gamma, *, norm=NORM, prenorm=PRENORM):
    """Pure-JAX replica of the PyTorch forward, for correctness checking."""
    n, C, H, W = x.shape
    if prenorm:
        normf = jnp.sqrt(jnp.sum(x.reshape(n, -1) ** 2, axis=-1))
        cwf = x / normf[:, None, None, None]
    else:
        cwf = x
    cwf = jnp.transpose(cwf, (1, 0, 2, 3))
    q = cwf.reshape(C, n, -1)
    energy = jnp.einsum('cik,cjk->cij', q, q)
    if norm == 1:
        cw = jnp.abs(jnp.sum(energy.reshape(C, -1), axis=1))
        cw = cw / jnp.max(cw)
        ne = energy * cw[:, None, None]
    elif norm == 2:
        denom = jnp.sqrt(jnp.sum(energy ** 2, axis=0, keepdims=True))
        ne = energy / (denom + 1e-10)
    else:
        ne = energy
    ne = jnp.max(ne, axis=-1, keepdims=True) - ne
    ne = jnp.mean(ne, axis=0)
    attn = jax.nn.softmax(ne, axis=-1)
    proj_value = x.reshape(n, -1)
    out = attn @ proj_value
    out = out.reshape(n, C, H, W)
    return gamma * out + x


if __name__ == "__main__":
    key = jax.random.PRNGKey(0)
    n_instance, C, H, W = 8, 4, 16, 16          # small test shapes
    x = jax.random.normal(key, (n_instance, C, H, W), dtype=jnp.float32)

    # nn.Parameter(torch.zeros(1)) -> shape (1,). Nonzero so the attention path
    # actually contributes to the output.
    gamma = jnp.full((1,), 0.5, dtype=jnp.float32)

    ref = ciam_reference(x, gamma)

    # f32-MXU path: tight check against the pure-JAX reference.
    out = jax.block_until_ready(ciam_forward(x, gamma, matmul_dtype=jnp.float32))
    assert out.shape == (n_instance, C, H, W)
    assert jnp.allclose(out, ref, atol=2e-3, rtol=2e-3), "f32 kernel mismatch vs reference"

    # Default bf16-MXU path (native MXU dtype on v5e/v6e/v7x): looser tolerance
    # since operands are rounded to bf16 before the matmuls (f32 accumulation).
    out_bf16 = jax.block_until_ready(ciam_forward(x, gamma))
    assert out_bf16.shape == (n_instance, C, H, W)
    assert jnp.allclose(out_bf16, ref, atol=5e-2, rtol=5e-2), "bf16 kernel mismatch vs reference"

    print("KERNEL_OK")
</pallas_src>

<mosaic_0001>
module attributes {stable_mosaic.version = 11 : i64} {
  func.func @_reduce_kernel(%arg0: i32, %arg1: memref<8x1024xf32, #tpu.memory_space<vmem>>, %arg2: memref<8x8xf32, #tpu.memory_space<vmem>>, %arg3: memref<4x8x8xf32, #tpu.memory_space<vmem>>, %arg4: memref<8x1xf32, #tpu.memory_space<vmem>>, %arg5: memref<8x8xf32, #tpu.memory_space<vmem>>) attributes {dimension_semantics = [#tpu.dimension_semantics<arbitrary>], iteration_bounds = array<i64: 1>, scalar_prefetch = 0 : i64, scratch_operands = 3 : i64, tpu.core_type = #tpu.core_type<tc>, window_params = [{transform_indices = @transform_0, window_bounds = array<i64: 8, 1024>}, {pipeline_mode = #tpu.pipeline_mode<synchronous>, transform_indices = @transform_1, window_bounds = array<i64: 8, 8>}]} {
    %c0_i32 = arith.constant 0 : i32
    %0 = arith.cmpi eq, %arg0, %c0_i32 : i32
    %1 = arith.extui %0 : i1 to i32
    %c0_i32_0 = arith.constant 0 : i32
    %2 = arith.cmpi ne, %1, %c0_i32_0 : i32
    scf.if %2 {
      %cst_58 = arith.constant 0.000000e+00 : f32
      %78 = vector.broadcast %cst_58 : f32 to vector<8x1xf32>
      %c0_59 = arith.constant 0 : index
      %c0_60 = arith.constant 0 : index
      %79 = vector.load %arg4[%c0_59, %c0_60] : memref<8x1xf32, #tpu.memory_space<vmem>>, vector<8x1xf32>
      tpu.vector_store %arg4[%c0_59, %c0_60], %78 {strides = array<i32>} : memref<8x1xf32, #tpu.memory_space<vmem>>, vector<8x1xf32>,
      %cst_61 = arith.constant 0.000000e+00 : f32
      %80 = vector.broadcast %cst_61 : f32 to vector<8x8xf32>
      %c0_62 = arith.constant 0 : index
      %c0_63 = arith.constant 0 : index
      %81 = vector.load %arg5[%c0_62, %c0_63] : memref<8x8xf32, #tpu.memory_space<vmem>>, vector<8x8xf32>
      tpu.vector_store %arg5[%c0_62, %c0_63], %80 {strides = array<i32>} : memref<8x8xf32, #tpu.memory_space<vmem>>, vector<8x8xf32>,
    } else {
    }
    %c0 = arith.constant 0 : index
    %c0_1 = arith.constant 0 : index
    %3 = vector.load %arg1[%c0, %c0_1] : memref<8x1024xf32, #tpu.memory_space<vmem>>, vector<8x256xf32>
    %c0_2 = arith.constant 0 : index
    %c0_3 = arith.constant 0 : index
    %4 = vector.load %arg4[%c0_2, %c0_3] : memref<8x1xf32, #tpu.memory_space<vmem>>, vector<8x1xf32>
    %5 = arith.mulf %3, %3 : vector<8x256xf32>
    %cst = arith.constant dense<0.000000e+00> : vector<8xf32>
    %6 = vector.multi_reduction <add>, %5, %cst [1] : vector<8x256xf32> to vector<8xf32>
    %7 = vector.shape_cast %6 : vector<8xf32> to vector<8x1xf32>
    %8 = arith.addf %4, %7 : vector<8x1xf32>
    %c0_4 = arith.constant 0 : index
    %c0_5 = arith.constant 0 : index
    %9 = vector.load %arg4[%c0_4, %c0_5] : memref<8x1xf32, #tpu.memory_space<vmem>>, vector<8x1xf32>
    tpu.vector_store %arg4[%c0_4, %c0_5], %8 {strides = array<i32>} : memref<8x1xf32, #tpu.memory_space<vmem>>, vector<8x1xf32>,
    %cst_6 = arith.constant dense<0.000000e+00> : vector<8x8xf32>
    %10 = tpu.matmul %3, %3, %cst_6 {dimension_numbers = #tpu.dot_dimension_numbers<[1], [1], [0], [0], [0, 0, 1, 0], [], []>} : vector<8x256xf32>, vector<8x256xf32>, vector<8x8xf32> -> vector<8x8xf32>
    %c4_i32 = arith.constant 4 : i32
    %11 = arith.muli %arg0, %c4_i32 : i32
    %c0_i32_7 = arith.constant 0 : i32
    %12 = arith.addi %11, %c0_i32_7 : i32
    %13 = arith.index_cast %12 : i32 to index
    %c0_8 = arith.constant 0 : index
    %c0_9 = arith.constant 0 : index
    %14 = vector.load %arg3[%13, %c0_8, %c0_9] : memref<4x8x8xf32, #tpu.memory_space<vmem>>, vector<1x8x8xf32>
    %15 = vector.shape_cast %14 : vector<1x8x8xf32> to vector<8x8xf32>
    %16 = vector.shape_cast %10 : vector<8x8xf32> to vector<1x8x8xf32>
    tpu.vector_store %arg3[%13, %c0_8, %c0_9], %16 {strides = array<i32>} : memref<4x8x8xf32, #tpu.memory_space<vmem>>, vector<1x8x8xf32>,
    %c0_10 = arith.constant 0 : index
    %c0_11 = arith.constant 0 : index
    %17 = vector.load %arg5[%c0_10, %c0_11] : memref<8x8xf32, #tpu.memory_space<vmem>>, vector<8x8xf32>
    %18 = arith.mulf %10, %10 : vector<8x8xf32>
    %19 = arith.addf %17, %18 : vector<8x8xf32>
    %c0_12 = arith.constant 0 : index
    %c0_13 = arith.constant 0 : index
    %20 = vector.load %arg5[%c0_12, %c0_13] : memref<8x8xf32, #tpu.memory_space<vmem>>, vector<8x8xf32>
    tpu.vector_store %arg5[%c0_12, %c0_13], %19 {strides = array<i32>} : memref<8x8xf32, #tpu.memory_space<vmem>>, vector<8x8xf32>,
    %c0_14 = arith.constant 0 : index
    %c256 = arith.constant 256 : index
    %21 = vector.load %arg1[%c0_14, %c256] : memref<8x1024xf32, #tpu.memory_space<vmem>>, vector<8x256xf32>
    %c0_15 = arith.constant 0 : index
    %c0_16 = arith.constant 0 : index
    %22 = vector.load %arg4[%c0_15, %c0_16] : memref<8x1xf32, #tpu.memory_space<vmem>>, vector<8x1xf32>
    %23 = arith.mulf %21, %21 : vector<8x256xf32>
    %cst_17 = arith.constant dense<0.000000e+00> : vector<8xf32>
    %24 = vector.multi_reduction <add>, %23, %cst_17 [1] : vector<8x256xf32> to vector<8xf32>
    %25 = vector.shape_cast %24 : vector<8xf32> to vector<8x1xf32>
    %26 = arith.addf %22, %25 : vector<8x1xf32>
    %c0_18 = arith.constant 0 : index
    %c0_19 = arith.constant 0 : index
    %27 = vector.load %arg4[%c0_18, %c0_19] : memref<8x1xf32, #tpu.memory_space<vmem>>, vector<8x1xf32>
    tpu.vector_store %arg4[%c0_18, %c0_19], %26 {strides = array<i32>} : memref<8x1xf32, #tpu.memory_space<vmem>>, vector<8x1xf32>,
    %cst_20 = arith.constant dense<0.000000e+00> : vector<8x8xf32>
    %28 = tpu.matmul %21, %21, %cst_20 {dimension_numbers = #tpu.dot_dimension_numbers<[1], [1], [0], [0], [0, 0, 1, 0], [], []>} : vector<8x256xf32>, vector<8x256xf32>, vector<8x8xf32> -> vector<8x8xf32>
    %c4_i32_21 = arith.constant 4 : i32
    %29 = arith.muli %arg0, %c4_i32_21 : i32
    %c1_i32 = arith.constant 1 : i32
    %30 = arith.addi %29, %c1_i32 : i32
    %31 = arith.index_cast %30 : i32 to index
    %c0_22 = arith.constant 0 : index
    %c0_23 = arith.constant 0 : index
    %32 = vector.load %arg3[%31, %c0_22, %c0_23] : memref<4x8x8xf32, #tpu.memory_space<vmem>>, vector<1x8x8xf32>
    %33 = vector.shape_cast %32 : vector<1x8x8xf32> to vector<8x8xf32>
    %34 = vector.shape_cast %28 : vector<8x8xf32> to vector<1x8x8xf32>
    tpu.vector_store %arg3[%31, %c0_22, %c0_23], %34 {strides = array<i32>} : memref<4x8x8xf32, #tpu.memory_space<vmem>>, vector<1x8x8xf32>,
    %c0_24 = arith.constant 0 : index
    %c0_25 = arith.constant 0 : index
    %35 = vector.load %arg5[%c0_24, %c0_25] : memref<8x8xf32, #tpu.memory_space<vmem>>, vector<8x8xf32>
    %36 = arith.mulf %28, %28 : vector<8x8xf32>
    %37 = arith.addf %35, %36 : vector<8x8xf32>
    %c0_26 = arith.constant 0 : index
    %c0_27 = arith.constant 0 : index
    %38 = vector.load %arg5[%c0_26, %c0_27] : memref<8x8xf32, #tpu.memory_space<vmem>>, vector<8x8xf32>
    tpu.vector_store %arg5[%c0_26, %c0_27], %37 {strides = array<i32>} : memref<8x8xf32, #tpu.memory_space<vmem>>, vector<8x8xf32>,
    %c0_28 = arith.constant 0 : index
    %c512 = arith.constant 512 : index
    %39 = vector.load %arg1[%c0_28, %c512] : memref<8x1024xf32, #tpu.memory_space<vmem>>, vector<8x256xf32>
    %c0_29 = arith.constant 0 : index
    %c0_30 = arith.constant 0 : index
    %40 = vector.load %arg4[%c0_29, %c0_30] : memref<8x1xf32, #tpu.memory_space<vmem>>, vector<8x1xf32>
    %41 = arith.mulf %39, %39 : vector<8x256xf32>
    %cst_31 = arith.constant dense<0.000000e+00> : vector<8xf32>
    %42 = vector.multi_reduction <add>, %41, %cst_31 [1] : vector<8x256xf32> to vector<8xf32>
    %43 = vector.shape_cast %42 : vector<8xf32> to vector<8x1xf32>
    %44 = arith.addf %40, %43 : vector<8x1xf32>
    %c0_32 = arith.constant 0 : index
    %c0_33 = arith.constant 0 : index
    %45 = vector.load %arg4[%c0_32, %c0_33] : memref<8x1xf32, #tpu.memory_space<vmem>>, vector<8x1xf32>
    tpu.vector_store %arg4[%c0_32, %c0_33], %44 {strides = array<i32>} : memref<8x1xf32, #tpu.memory_space<vmem>>, vector<8x1xf32>,
    %cst_34 = arith.constant dense<0.000000e+00> : vector<8x8xf32>
    %46 = tpu.matmul %39, %39, %cst_34 {dimension_numbers = #tpu.dot_dimension_numbers<[1], [1], [0], [0], [0, 0, 1, 0], [], []>} : vector<8x256xf32>, vector<8x256xf32>, vector<8x8xf32> -> vector<8x8xf32>
    %c4_i32_35 = arith.constant 4 : i32
    %47 = arith.muli %arg0, %c4_i32_35 : i32
    %c2_i32 = arith.constant 2 : i32
    %48 = arith.addi %47, %c2_i32 : i32
    %49 = arith.index_cast %48 : i32 to index
    %c0_36 = arith.constant 0 : index
    %c0_37 = arith.constant 0 : index
    %50 = vector.load %arg3[%49, %c0_36, %c0_37] : memref<4x8x8xf32, #tpu.memory_space<vmem>>, vector<1x8x8xf32>
    %51 = vector.shape_cast %50 : vector<1x8x8xf32> to vector<8x8xf32>
    %52 = vector.shape_cast %46 : vector<8x8xf32> to vector<1x8x8xf32>
    tpu.vector_store %arg3[%49, %c0_36, %c0_37], %52 {strides = array<i32>} : memref<4x8x8xf32, #tpu.memory_space<vmem>>, vector<1x8x8xf32>,
    %c0_38 = arith.constant 0 : index
    %c0_39 = arith.constant 0 : index
    %53 = vector.load %arg5[%c0_38, %c0_39] : memref<8x8xf32, #tpu.memory_space<vmem>>, vector<8x8xf32>
    %54 = arith.mulf %46, %46 : vector<8x8xf32>
    %55 = arith.addf %53, %54 : vector<8x8xf32>
    %c0_40 = arith.constant 0 : index
    %c0_41 = arith.constant 0 : index
    %56 = vector.load %arg5[%c0_40, %c0_41] : memref<8x8xf32, #tpu.memory_space<vmem>>, vector<8x8xf32>
    tpu.vector_store %arg5[%c0_40, %c0_41], %55 {strides = array<i32>} : memref<8x8xf32, #tpu.memory_space<vmem>>, vector<8x8xf32>,
    %c0_42 = arith.constant 0 : index
    %c768 = arith.constant 768 : index
    %57 = vector.load %arg1[%c0_42, %c768] : memref<8x1024xf32, #tpu.memory_space<vmem>>, vector<8x256xf32>
    %c0_43 = arith.constant 0 : index
    %c0_44 = arith.constant 0 : index
    %58 = vector.load %arg4[%c0_43, %c0_44] : memref<8x1xf32, #tpu.memory_space<vmem>>, vector<8x1xf32>
    %59 = arith.mulf %57, %57 : vector<8x256xf32>
    %cst_45 = arith.constant dense<0.000000e+00> : vector<8xf32>
    %60 = vector.multi_reduction <add>, %59, %cst_45 [1] : vector<8x256xf32> to vector<8xf32>
    %61 = vector.shape_cast %60 : vector<8xf32> to vector<8x1xf32>
    %62 = arith.addf %58, %61 : vector<8x1xf32>
    %c0_46 = arith.constant 0 : index
    %c0_47 = arith.constant 0 : index
    %63 = vector.load %arg4[%c0_46, %c0_47] : memref<8x1xf32, #tpu.memory_space<vmem>>, vector<8x1xf32>
    tpu.vector_store %arg4[%c0_46, %c0_47], %62 {strides = array<i32>} : memref<8x1xf32, #tpu.memory_space<vmem>>, vector<8x1xf32>,
    %cst_48 = arith.constant dense<0.000000e+00> : vector<8x8xf32>
    %64 = tpu.matmul %57, %57, %cst_48 {dimension_numbers = #tpu.dot_dimension_numbers<[1], [1], [0], [0], [0, 0, 1, 0], [], []>} : vector<8x256xf32>, vector<8x256xf32>, vector<8x8xf32> -> vector<8x8xf32>
    %c4_i32_49 = arith.constant 4 : i32
    %65 = arith.muli %arg0, %c4_i32_49 : i32
    %c3_i32 = arith.constant 3 : i32
    %66 = arith.addi %65, %c3_i32 : i32
    %67 = arith.index_cast %66 : i32 to index
    %c0_50 = arith.constant 0 : index
    %c0_51 = arith.constant 0 : index
    %68 = vector.load %arg3[%67, %c0_50, %c0_51] : memref<4x8x8xf32, #tpu.memory_space<vmem>>, vector<1x8x8xf32>
    %69 = vector.shape_cast %68 : vector<1x8x8xf32> to vector<8x8xf32>
    %70 = vector.shape_cast %64 : vector<8x8xf32> to vector<1x8x8xf32>
    tpu.vector_store %arg3[%67, %c0_50, %c0_51], %70 {strides = array<i32>} : memref<4x8x8xf32, #tpu.memory_space<vmem>>, vector<1x8x8xf32>,
    %c0_52 = arith.constant 0 : index
    %c0_53 = arith.constant 0 : index
    %71 = vector.load %arg5[%c0_52, %c0_53] : memref<8x8xf32, #tpu.memory_space<vmem>>, vector<8x8xf32>
    %72 = arith.mulf %64, %64 : vector<8x8xf32>
    %73 = arith.addf %71, %72 : vector<8x8xf32>
    %c0_54 = arith.constant 0 : index
    %c0_55 = arith.constant 0 : index
    %74 = vector.load %arg5[%c0_54, %c0_55] : memref<8x8xf32, #tpu.memory_space<vmem>>, vector<8x8xf32>
    tpu.vector_store %arg5[%c0_54, %c0_55], %73 {strides = array<i32>} : memref<8x8xf32, #tpu.memory_space<vmem>>, vector<8x8xf32>,
    %c0_i32_56 = arith.constant 0 : i32
    %75 = arith.cmpi eq, %arg0, %c0_i32_56 : i32
    %76 = arith.extui %75 : i1 to i32
    %c0_i32_57 = arith.constant 0 : i32
    %77 = arith.cmpi ne, %76, %c0_i32_57 : i32
    scf.if %77 {
      %c0_58 = arith.constant 0 : index
      %c0_59 = arith.constant 0 : index
      %78 = vector.load %arg4[%c0_58, %c0_59] : memref<8x1xf32, #tpu.memory_space<vmem>>, vector<8x1xf32>
      %79 = math.rsqrt %78 : vector<8x1xf32>
      %cst_60 = arith.constant dense<0.000000e+00> : vector<8x8xf32>
      %80 = tpu.matmul %79, %79, %cst_60 {dimension_numbers = #tpu.dot_dimension_numbers<[1], [1], [0], [0], [0, 0, 1, 0], [], []>} : vector<8x1xf32>, vector<8x1xf32>, vector<8x8xf32> -> vector<8x8xf32>
      %c0_61 = arith.constant 0 : index
      %c0_62 = arith.constant 0 : index
      %81 = vector.load %arg5[%c0_61, %c0_62] : memref<8x8xf32, #tpu.memory_space<vmem>>, vector<8x8xf32>
      %82 = math.sqrt %81 : vector<8x8xf32>
      %83 = arith.mulf %82, %80 : vector<8x8xf32>
      %cst_63 = arith.constant 1.000000e-10 : f32
      %84 = vector.broadcast %cst_63 : f32 to vector<8x8xf32>
      %85 = arith.addf %83, %84 : vector<8x8xf32>
      %86 = arith.divf %80, %85 : vector<8x8xf32>
      %cst_64 = arith.constant 0.000000e+00 : f32
      %87 = vector.broadcast %cst_64 : f32 to vector<8x1xf32>
      %cst_65 = arith.constant 0.000000e+00 : f32
      %88 = vector.broadcast %cst_65 : f32 to vector<8x8xf32>
      %c0_i32_66 = arith.constant 0 : i32
      %c4_i32_67 = arith.constant 4 : i32
      %89 = arith.muli %c0_i32_66, %c4_i32_67 : i32
      %90 = arith.index_cast %89 : i32 to index
      %c0_68 = arith.constant 0 : index
      %c0_69 = arith.constant 0 : index
      %91 = vector.load %arg3[%90, %c0_68, %c0_69] : memref<4x8x8xf32, #tpu.memory_space<vmem>>, vector<4x8x8xf32>
      %92 = vector.shape_cast %86 : vector<8x8xf32> to vector<1x8x8xf32>
      %93 = vector.broadcast %92 : vector<1x8x8xf32> to vector<4x8x8xf32>
      %94 = arith.mulf %91, %93 : vector<4x8x8xf32>
      %cst_70 = arith.constant dense<0xFF800000> : vector<4x8xf32>
      %95 = vector.multi_reduction <maximumf>, %94, %cst_70 [2] : vector<4x8x8xf32> to vector<4x8xf32>
      %96 = vector.shape_cast %95 : vector<4x8xf32> to vector<4x8x1xf32>
      %cst_71 = arith.constant dense<0.000000e+00> : vector<8x1xf32>
      %97 = vector.multi_reduction <add>, %96, %cst_71 [0] : vector<4x8x1xf32> to vector<8x1xf32>
      %98 = arith.addf %87, %97 : vector<8x1xf32>
      %cst_72 = arith.constant dense<0.000000e+00> : vector<8x8xf32>
      %99 = vector.multi_reduction <add>, %94, %cst_72 [0] : vector<4x8x8xf32> to vector<8x8xf32>
      %100 = arith.addf %88, %99 : vector<8x8xf32>
      %c1_i32_73 = arith.constant 1 : i32
      %101 = vector.broadcast %98 : vector<8x1xf32> to vector<8x8xf32>
      %102 = arith.subf %101, %100 : vector<8x8xf32>
      %cst_74 = arith.constant 2.500000e-01 : f32
      %103 = vector.broadcast %cst_74 : f32 to vector<8x8xf32>
      %104 = arith.mulf %102, %103 : vector<8x8xf32>
      %cst_75 = arith.constant dense<0xFF800000> : vector<8xf32>
      %105 = vector.multi_reduction <maximumf>, %104, %cst_75 [1] : vector<8x8xf32> to vector<8xf32>
      %106 = vector.shape_cast %105 : vector<8xf32> to vector<8x1xf32>
      %107 = vector.broadcast %106 : vector<8x1xf32> to vector<8x8xf32>
      %108 = arith.subf %104, %107 : vector<8x8xf32>
      %109 = math.exp %108 : vector<8x8xf32>
      %cst_76 = arith.constant dense<0.000000e+00> : vector<8xf32>
      %110 = vector.multi_reduction <add>, %109, %cst_76 [1] : vector<8x8xf32> to vector<8xf32>
      %111 = vector.shape_cast %110 : vector<8xf32> to vector<8x1xf32>
      %112 = vector.broadcast %111 : vector<8x1xf32> to vector<8x8xf32>
      %113 = arith.divf %109, %112 : vector<8x8xf32>
      %c0_77 = arith.constant 0 : index
      %c0_78 = arith.constant 0 : index
      %114 = vector.load %arg2[%c0_77, %c0_78] : memref<8x8xf32, #tpu.memory_space<vmem>>, vector<8x8xf32>
      tpu.vector_store %arg2[%c0_77, %c0_78], %113 {strides = array<i32>} : memref<8x8xf32, #tpu.memory_space<vmem>>, vector<8x8xf32>,
    } else {
    }
    return
  }
  func.func @transform_0(%arg0: i32) -> (i32, i32) {
    %c0_i32 = arith.constant 0 : i32
    %c0_i32_0 = arith.constant 0 : i32
    return %c0_i32, %arg0 : i32, i32
  }
  func.func @transform_1(%arg0: i32) -> (i32, i32) {
    %c0_i32 = arith.constant 0 : i32
    %c0_i32_0 = arith.constant 0 : i32
    %c0_i32_1 = arith.constant 0 : i32
    return %c0_i32, %c0_i32_0 : i32, i32
  }
}

</mosaic_0001>

<llo_original>
// kernel: tpu_custom_call.1
$region0: #{tpu_custom_call.1}
  #allocation0 [shape = 'u32[]', space=smem, size = 0x4, offset = 0x4, fixed_abs, tag = 'smem constant byte address 0x4 - core index']
  #allocation1 [shape = 'u32[72,128]{1,0:T(1,128)}', space=vmem, size = 0x9000, scoped, tag = 'internal scratch']
  #allocation2 [shape = 'f32[4,8,8]{2,1,0:T(8,128)}', space=vmem, size = 0x4000, scoped, tag = 'scratch operand']
  #allocation3 [shape = 'f32[8,1]{1,0:T(8,128)}', space=vmem, size = 0x1000, scoped, tag = 'scratch operand']
  #allocation4 [shape = 'f32[8,8]{1,0:T(8,128)}', space=vmem, size = 0x1000, scoped, tag = 'scratch operand']
  %s0 = inlined_call_operand.hbm [shape: f32[8,1024], index: 0, kind: input, shape index: {}]
  %s1 = inlined_call_operand.hbm [shape: f32[8,8], index: 1, kind: output, shape index: {}]
  %s2 = sld [smem:[#allocation0]]
  $region26: #{tpu_custom_call.1} parent=0
    _
  %s4 = ssub.s32 1, %s2
  %s5 = scalar_select 0, %s4, %s2
  $region1: #{tpu_custom_call.1} parent=0
    #allocation5 [shape = 'u8[32768]{0}', space=vmem, size = 0x8000, scoped, tag = 'input window, operand 0, single buffered']
    #allocation6 [shape = 's32[1]{0}', space=sflag, size = 0x4, scoped, tag = 'scoped memory for tpu_custom_call.1']
    #allocation7 [shape = 's32[1]{0}', space=sflag, size = 0x4, scoped, tag = 'scoped memory for tpu_custom_call.1']
    #allocation8 [shape = 'u8[4096]{0}', space=vmem, size = 0x1000, scoped, tag = 'output window, operand 0, single buffered']
    %6 = vsyncpa [#allocation6], 0
    %7 = vsyncpa [#allocation7], 0
    // Predicated region
    $region2: #{tpu_custom_call.1} parent=1 // pred_check
      _
    $region3: #{tpu_custom_call.1} parent=1 // pred_check_branch
      %9 = sbr.rel (0) target = $region5
    $region4: #{tpu_custom_call.1} parent=1 // pred_region
      %11 = vsyncadd [#allocation6], 0
      %s13 = sshll.u32 %s0, 4
      %s14 = int_to_ptr.hbm [resolvable:$true] %s13
      %s15 = sshll.u32 [#allocation5], 4
      %s16 = int_to_ptr.vmem [resolvable:$true] %s15
      %18 = dma.hbm_to_vmem [thread:$0]  %s14, 1024, %s16, [#allocation6]
    $region5: #{tpu_custom_call.1} parent=1 // pred_fallthru
      _
    // Predicated region
    $region6: #{tpu_custom_call.1} parent=1 // pred_check
      _
    $region7: #{tpu_custom_call.1} parent=1 // pred_check_branch
      %20 = sbr.rel (0) target = $region9
    $region8: #{tpu_custom_call.1} parent=1 // pred_region
      %22 = dma.done [#allocation6], 1024
    $region9: #{tpu_custom_call.1} parent=1 // pred_fallthru
      _
    %p23 = scmp.eq.s32.totalorder 0, 0
    // Predicated region
    $region10: #{tpu_custom_call.1} parent=1 // pred_check
      %p24 = pneg %p23
    $region11: #{tpu_custom_call.1} parent=1 // pred_check_branch
      %26 = sbr.rel (%p24) target = $region13
    $region12: #{tpu_custom_call.1} parent=1 // pred_region
      %vm27 = vcmask 7168
      %28 = vst.msk [vmem:[#allocation3] sm:$0xff] %vm27, 0.0
      %vm29 = vcmask 64512
      %30 = vst.msk [vmem:[#allocation4] sm:$0xff] %vm29, 0.0
    $region13: #{tpu_custom_call.1} parent=1 // pred_fallthru
      _
    %v31 = vld [vmem:[#allocation5] sm:$0xff]
    %v32 = vld [vmem:[#allocation5 + $0x8] sm:$0xff]
    %v33 = vld [vmem:[#allocation3] sm:$0xff]
    %v34 = vmul.f32 %v31, %v31
    %v35 = vmul.f32 %v32, %v32
    %v36 = vadd.f32 %v34, %v35
    %37 = vadd.xlane.f32.xlu0 %v36
    %v38 = vpop.xlane.xlu0 %37
    %v39 = vadd.f32 %v33, %v38
    %vm40 = vcmask 7168
    %41 = vst.msk [vmem:[#allocation3] sm:$0xff] %vm40, %v39
    %42 = vmatpush.xpose.msra.mxu0 0.0
    %43 = vmatpush.xpose.msra.mxu0 0.0
    %44 = vmatpush.xpose.msra.mxu0 0.0
    %45 = vmatpush.xpose.msra.mxu0 0.0
    %46 = vmatpush.xpose.msra.mxu0 0.0
    %47 = vmatpush.xpose.msra.mxu0 0.0
    %48 = vmatpush.xpose.msra.mxu0 0.0
    %49 = vmatpush.xpose.msra.mxu0 0.0
    %50 = vmatpush.xpose.msra.mxu0 0.0
    %51 = vmatpush.xpose.msra.mxu0 0.0
    %52 = vmatpush.xpose.msra.mxu0 0.0
    %53 = vmatpush.xpose.msra.mxu0 0.0
    %54 = vmatpush.xpose.msra.mxu0 0.0
    %55 = vmatpush.xpose.msra.mxu0 0.0
    %56 = vmatpush.xpose.msra.mxu0 0.0
    %57 = vmatpush.xpose.msra.mxu0 %v31
    %58 = vmatmul.f32.gmra.mxu0 %v31
    %v59 = vpop.f32.mrf.mxu0
    %v60 = vadd.f32 0.0, %v59
    %61 = vdwg.mxu0
    %62 = vmatpush.xpose.msra.mxu0 0.0
    %63 = vmatpush.xpose.msra.mxu0 0.0
    %64 = vmatpush.xpose.msra.mxu0 0.0
    %65 = vmatpush.xpose.msra.mxu0 0.0
    %66 = vmatpush.xpose.msra.mxu0 0.0
    %67 = vmatpush.xpose.msra.mxu0 0.0
    %68 = vmatpush.xpose.msra.mxu0 0.0
    %69 = vmatpush.xpose.msra.mxu0 0.0
    %70 = vmatpush.xpose.msra.mxu0 0.0
    %71 = vmatpush.xpose.msra.mxu0 0.0
    %72 = vmatpush.xpose.msra.mxu0 0.0
    %73 = vmatpush.xpose.msra.mxu0 0.0
    %74 = vmatpush.xpose.msra.mxu0 0.0
    %75 = vmatpush.xpose.msra.mxu0 0.0
    %76 = vmatpush.xpose.msra.mxu0 0.0
    %77 = vmatpush.xpose.msra.mxu0 %v32
    %78 = vmatmul.f32.gmra.mxu0 %v32
    %v79 = vpop.f32.mrf.mxu0
    %v80 = vadd.f32 %v60, %v79
    %81 = vdwg.mxu0
    %s82 = smul.u32 0, 4
    %s83 = smul.u32 %s82, 8
    %s84 = scalar_lea.vmem [#allocation2], %s83
    %vm85 = vcmask 64512
    %86 = vst.msk [vmem:[%s84] sm:$0xff] %vm85, %v80
    %v87 = vld [vmem:[#allocation4] sm:$0xff]
    %v88 = vmul.f32 %v80, %v80
    %v89 = vadd.f32 %v87, %v88
    %90 = vst.msk [vmem:[#allocation4] sm:$0xff] %vm85, %v89
    %v91 = vld [vmem:[#allocation5 + $0x10] sm:$0xff]
    %v92 = vld [vmem:[#allocation5 + $0x18] sm:$0xff]
    %v93 = vld [vmem:[#allocation3] sm:$0xff]
    %v94 = vmul.f32 %v91, %v91
    %v95 = vmul.f32 %v92, %v92
    %v96 = vadd.f32 %v94, %v95
    %97 = vadd.xlane.f32.xlu0 %v96
    %v98 = vpop.xlane.xlu0 %97
    %v99 = vadd.f32 %v93, %v98
    %100 = vst.msk [vmem:[#allocation3] sm:$0xff] %vm40, %v99
    %101 = vmatpush.xpose.msra.mxu0 0.0
    %102 = vmatpush.xpose.msra.mxu0 0.0
    %103 = vmatpush.xpose.msra.mxu0 0.0
    %104 = vmatpush.xpose.msra.mxu0 0.0
    %105 = vmatpush.xpose.msra.mxu0 0.0
    %106 = vmatpush.xpose.msra.mxu0 0.0
    %107 = vmatpush.xpose.msra.mxu0 0.0
    %108 = vmatpush.xpose.msra.mxu0 0.0
    %109 = vmatpush.xpose.msra.mxu0 0.0
    %110 = vmatpush.xpose.msra.mxu0 0.0
    %111 = vmatpush.xpose.msra.mxu0 0.0
    %112 = vmatpush.xpose.msra.mxu0 0.0
    %113 = vmatpush.xpose.msra.mxu0 0.0
    %114 = vmatpush.xpose.msra.mxu0 0.0
    %115 = vmatpush.xpose.msra.mxu0 0.0
    %116 = vmatpush.xpose.msra.mxu0 %v91
    %117 = vmatmul.f32.gmra.mxu0 %v91
    %v118 = vpop.f32.mrf.mxu0
    %v119 = vadd.f32 0.0, %v118
    %120 = vdwg.mxu0
    %121 = vmatpush.xpose.msra.mxu0 0.0
    %122 = vmatpush.xpose.msra.mxu0 0.0
    %123 = vmatpush.xpose.msra.mxu0 0.0
    %124 = vmatpush.xpose.msra.mxu0 0.0
    %125 = vmatpush.xpose.msra.mxu0 0.0
    %126 = vmatpush.xpose.msra.mxu0 0.0
    %127 = vmatpush.xpose.msra.mxu0 0.0
    %128 = vmatpush.xpose.msra.mxu0 0.0
    %129 = vmatpush.xpose.msra.mxu0 0.0
    %130 = vmatpush.xpose.msra.mxu0 0.0
    %131 = vmatpush.xpose.msra.mxu0 0.0
    %132 = vmatpush.xpose.msra.mxu0 0.0
    %133 = vmatpush.xpose.msra.mxu0 0.0
    %134 = vmatpush.xpose.msra.mxu0 0.0
    %135 = vmatpush.xpose.msra.mxu0 0.0
    %136 = vmatpush.xpose.msra.mxu0 %v92
    %137 = vmatmul.f32.gmra.mxu0 %v92
    %v138 = vpop.f32.mrf.mxu0
    %v139 = vadd.f32 %v119, %v138
    %140 = vdwg.mxu0
    %s141 = sadd.s32 %s82, 1
    %s142 = smul.u32 %s141, 8
    %s143 = scalar_lea.vmem [#allocation2], %s142
    %144 = vst.msk [vmem:[%s143] sm:$0xff] %vm85, %v139
    %v145 = vld [vmem:[#allocation4] sm:$0xff]
    %v146 = vmul.f32 %v139, %v139
    %v147 = vadd.f32 %v145, %v146
    %148 = vst.msk [vmem:[#allocation4] sm:$0xff] %vm85, %v147
    %v149 = vld [vmem:[#allocation5 + $0x20] sm:$0xff]
    %v150 = vld [vmem:[#allocation5 + $0x28] sm:$0xff]
    %v151 = vld [vmem:[#allocation3] sm:$0xff]
    %v152 = vmul.f32 %v149, %v149
    %v153 = vmul.f32 %v150, %v150
    %v154 = vadd.f32 %v152, %v153
    %155 = vadd.xlane.f32.xlu0 %v154
    %v156 = vpop.xlane.xlu0 %155
    %v157 = vadd.f32 %v151, %v156
    %158 = vst.msk [vmem:[#allocation3] sm:$0xff] %vm40, %v157
    %159 = vmatpush.xpose.msra.mxu0 0.0
    %160 = vmatpush.xpose.msra.mxu0 0.0
    %161 = vmatpush.xpose.msra.mxu0 0.0
    %162 = vmatpush.xpose.msra.mxu0 0.0
    %163 = vmatpush.xpose.msra.mxu0 0.0
    %164 = vmatpush.xpose.msra.mxu0 0.0
    %165 = vmatpush.xpose.msra.mxu0 0.0
    %166 = vmatpush.xpose.msra.mxu0 0.0
    %167 = vmatpush.xpose.msra.mxu0 0.0
    %168 = vmatpush.xpose.msra.mxu0 0.0
    %169 = vmatpush.xpose.msra.mxu0 0.0
    %170 = vmatpush.xpose.msra.mxu0 0.0
    %171 = vmatpush.xpose.msra.mxu0 0.0
    %172 = vmatpush.xpose.msra.mxu0 0.0
    %173 = vmatpush.xpose.msra.mxu0 0.0
    %174 = vmatpush.xpose.msra.mxu0 %v149
    %175 = vmatmul.f32.gmra.mxu0 %v149
    %v176 = vpop.f32.mrf.mxu0
    %v177 = vadd.f32 0.0, %v176
    %178 = vdwg.mxu0
    %179 = vmatpush.xpose.msra.mxu0 0.0
    %180 = vmatpush.xpose.msra.mxu0 0.0
    %181 = vmatpush.xpose.msra.mxu0 0.0
    %182 = vmatpush.xpose.msra.mxu0 0.0
    %183 = vmatpush.xpose.msra.mxu0 0.0
    %184 = vmatpush.xpose.msra.mxu0 0.0
    %185 = vmatpush.xpose.msra.mxu0 0.0
    %186 = vmatpush.xpose.msra.mxu0 0.0
    %187 = vmatpush.xpose.msra.mxu0 0.0
    %188 = vmatpush.xpose.msra.mxu0 0.0
    %189 = vmatpush.xpose.msra.mxu0 0.0
    %190 = vmatpush.xpose.msra.mxu0 0.0
    %191 = vmatpush.xpose.msra.mxu0 0.0
    %192 = vmatpush.xpose.msra.mxu0 0.0
    %193 = vmatpush.xpose.msra.mxu0 0.0
    %194 = vmatpush.xpose.msra.mxu0 %v150
    %195 = vmatmul.f32.gmra.mxu0 %v150
    %v196 = vpop.f32.mrf.mxu0
    %v197 = vadd.f32 %v177, %v196
    %198 = vdwg.mxu0
    %s199 = sadd.s32 %s82, 2
    %s200 = smul.u32 %s199, 8
    %s201 = scalar_lea.vmem [#allocation2], %s200
    %202 = vst.msk [vmem:[%s201] sm:$0xff] %vm85, %v197
    %v203 = vld [vmem:[#allocation4] sm:$0xff]
    %v204 = vmul.f32 %v197, %v197
    %v205 = vadd.f32 %v203, %v204
    %206 = vst.msk [vmem:[#allocation4] sm:$0xff] %vm85, %v205
    %v207 = vld [vmem:[#allocation5 + $0x30] sm:$0xff]
    %v208 = vld [vmem:[#allocation5 + $0x38] sm:$0xff]
    %v209 = vld [vmem:[#allocation3] sm:$0xff]
    %v210 = vmul.f32 %v207, %v207
    %v211 = vmul.f32 %v208, %v208
    %v212 = vadd.f32 %v210, %v211
    %213 = vadd.xlane.f32.xlu0 %v212
    %v214 = vpop.xlane.xlu0 %213
    %v215 = vadd.f32 %v209, %v214
    %216 = vst.msk [vmem:[#allocation3] sm:$0xff] %vm40, %v215
    %217 = vmatpush.xpose.msra.mxu0 0.0
    %218 = vmatpush.xpose.msra.mxu0 0.0
    %219 = vmatpush.xpose.msra.mxu0 0.0
    %220 = vmatpush.xpose.msra.mxu0 0.0
    %221 = vmatpush.xpose.msra.mxu0 0.0
    %222 = vmatpush.xpose.msra.mxu0 0.0
    %223 = vmatpush.xpose.msra.mxu0 0.0
    %224 = vmatpush.xpose.msra.mxu0 0.0
    %225 = vmatpush.xpose.msra.mxu0 0.0
    %226 = vmatpush.xpose.msra.mxu0 0.0
    %227 = vmatpush.xpose.msra.mxu0 0.0
    %228 = vmatpush.xpose.msra.mxu0 0.0
    %229 = vmatpush.xpose.msra.mxu0 0.0
    %230 = vmatpush.xpose.msra.mxu0 0.0
    %231 = vmatpush.xpose.msra.mxu0 0.0
    %232 = vmatpush.xpose.msra.mxu0 %v207
    %233 = vmatmul.f32.gmra.mxu0 %v207
    %v234 = vpop.f32.mrf.mxu0
    %v235 = vadd.f32 0.0, %v234
    %236 = vdwg.mxu0
    %237 = vmatpush.xpose.msra.mxu0 0.0
    %238 = vmatpush.xpose.msra.mxu0 0.0
    %239 = vmatpush.xpose.msra.mxu0 0.0
    %240 = vmatpush.xpose.msra.mxu0 0.0
    %241 = vmatpush.xpose.msra.mxu0 0.0
    %242 = vmatpush.xpose.msra.mxu0 0.0
    %243 = vmatpush.xpose.msra.mxu0 0.0
    %244 = vmatpush.xpose.msra.mxu0 0.0
    %245 = vmatpush.xpose.msra.mxu0 0.0
    %246 = vmatpush.xpose.msra.mxu0 0.0
    %247 = vmatpush.xpose.msra.mxu0 0.0
    %248 = vmatpush.xpose.msra.mxu0 0.0
    %249 = vmatpush.xpose.msra.mxu0 0.0
    %250 = vmatpush.xpose.msra.mxu0 0.0
    %251 = vmatpush.xpose.msra.mxu0 0.0
    %252 = vmatpush.xpose.msra.mxu0 %v208
    %253 = vmatmul.f32.gmra.mxu0 %v208
    %v254 = vpop.f32.mrf.mxu0
    %v255 = vadd.f32 %v235, %v254
    %256 = vdwg.mxu0
    %s257 = sadd.s32 %s82, 3
    %s258 = smul.u32 %s257, 8
    %s259 = scalar_lea.vmem [#allocation2], %s258
    %260 = vst.msk [vmem:[%s259] sm:$0xff] %vm85, %v255
    %v261 = vld [vmem:[#allocation4] sm:$0xff]
    %v262 = vmul.f32 %v255, %v255
    %v263 = vadd.f32 %v261, %v262
    %264 = vst.msk [vmem:[#allocation4] sm:$0xff] %vm85, %v263
    // Predicated region
    $region14: #{tpu_custom_call.1} parent=1 // pred_check
      %p265 = pneg %p23
    $region15: #{tpu_custom_call.1} parent=1 // pred_check_branch
      %267 = sbr.rel (%p265) target = $region17
    $region16: #{tpu_custom_call.1} parent=1 // pred_region
      %v268 = vld [vmem:[#allocation3] sm:$0xff]
      %v269 = vrsqrt.pop %v268
      %v270 = vmul.f32 %v269, %v268
      %v271 = vmul.f32 %v270, %v269
      %v272 = vmul.f32 0.5, %v271
      %v273 = vsub.f32 1.5, %v272
      %v274 = vmul.f32 %v269, %v273
      %vm275 = vweird.f32 %v268
      %vm276 = vweird.f32 %v269
      %vm277 = vmor %vm275, %vm276
      %v278 = vsel %vm277, %v269, %v274
      %v280 = vsel %vm40, %v278, 0
      %282 = vmatpush.xpose.msra.mxu0 0.0
      %283 = vmatpush.xpose.msra.mxu0 0.0
      %284 = vmatpush.xpose.msra.mxu0 0.0
      %285 = vmatpush.xpose.msra.mxu0 0.0
      %286 = vmatpush.xpose.msra.mxu0 0.0
      %287 = vmatpush.xpose.msra.mxu0 0.0
      %288 = vmatpush.xpose.msra.mxu0 0.0
      %289 = vmatpush.xpose.msra.mxu0 0.0
      %290 = vmatpush.xpose.msra.mxu0 0.0
      %291 = vmatpush.xpose.msra.mxu0 0.0
      %292 = vmatpush.xpose.msra.mxu0 0.0
      %293 = vmatpush.xpose.msra.mxu0 0.0
      %294 = vmatpush.xpose.msra.mxu0 0.0
      %295 = vmatpush.xpose.msra.mxu0 0.0
      %296 = vmatpush.xpose.msra.mxu0 0.0
      %297 = vmatpush.xpose.msra.mxu0 %v280
      %298 = vmatmul.f32.gmra.mxu0 %v280
      %v299 = vpop.f32.mrf.mxu0
      %v300 = vadd.f32 0.0, %v299
      %301 = vdwg.mxu0
      %v302 = vld [vmem:[#allocation4] sm:$0xff]
      %v303 = vrsqrt.pop %v302
      %v304 = vmul.f32 %v303, %v302
      %v305 = vmul.f32 %v304, %v303
      %v306 = vmul.f32 0.5, %v305
      %v307 = vsub.f32 1.5, %v306
      %v308 = vmul.f32 %v303, %v307
      %v309 = vmul.f32 %v302, %v308
      %vm310 = vcmp.eq.f32.partialorder %v302, inf
      %v311 = vsel %vm310, %v302, %v309
      %vm312 = vcmp.eq.f32.partialorder %v302, 0.0
      %v313 = vand.u32 %v302, 2147483648
      %v314 = vsel %vm312, %v313, %v311
      %v315 = vmul.f32 %v314, %v300
      %v316 = vadd.f32 %v315, 1e-10
      %v317 = vrcp.pop %v316
      %v318 = vmul.f32 %v316, %v317
      %v319 = vsub.f32 1.0, %v318
      %v320 = vmul.f32 %v317, %v319
      %v321 = vadd.f32 %v317, %v320
      %vm322 = vweird.f32 %v316
      %vm323 = vweird.f32 %v317
      %vm324 = vmor %vm322, %vm323
      %v325 = vsel %vm324, %v317, %v321
      %v326 = vand.u32 2147483647, %v316
      %vm327 = vcmp.eq.f32.partialorder %v326, 8.507059e+37
      %v328 = vand.u32 %v316, 2147483648
      %v329 = vor.u32 1.1754944e-38, %v328
      %v330 = vsel %vm327, %v329, %v325
      %v331 = vmul.f32 %v300, %v330
      %v332 = vld [vmem:[#allocation2] sm:$0xff]
      %v333 = vld [vmem:[#allocation2 + $0x8] sm:$0xff]
      %v334 = vld [vmem:[#allocation2 + $0x10] sm:$0xff]
      %v335 = vld [vmem:[#allocation2 + $0x18] sm:$0xff]
      %v336 = vmul.f32 %v332, %v331
      %v337 = vmul.f32 %v333, %v331
      %v338 = vmul.f32 %v334, %v331
      %v339 = vmul.f32 %v335, %v331
      %v340 = vsel %vm85, %v336, -inf
      %341 = vmax.xlane.f32.xlu0 %v340
      %v342 = vpop.xlane.xlu0 %341
      %v343 = vsel %vm85, %v337, -inf
      %344 = vmax.xlane.f32.xlu0 %v343
      %v345 = vpop.xlane.xlu0 %344
      %v346 = vsel %vm85, %v338, -inf
      %347 = vmax.xlane.f32.xlu0 %v346
      %v348 = vpop.xlane.xlu0 %347
      %v349 = vsel %vm85, %v339, -inf
      %350 = vmax.xlane.f32.xlu0 %v349
      %v351 = vpop.xlane.xlu0 %350
      %v352 = vadd.f32 %v342, %v345
      %v353 = vadd.f32 %v352, %v348
      %v354 = vadd.f32 %v353, %v351
      %v355 = vadd.f32 %v354, 0.0
      %v356 = vsel %vm85, %v336, 0.0
      %v357 = vsel %vm85, %v337, 0.0
      %v358 = vadd.f32 %v356, %v357
      %v359 = vsel %vm85, %v338, 0.0
      %v360 = vadd.f32 %v358, %v359
      %v361 = vsel %vm85, %v339, 0.0
      %v362 = vadd.f32 %v360, %v361
      %v363 = vadd.f32 %v362, 0.0
      %v364 = vsub.f32 %v355, %v363
      %v365 = vmul.f32 %v364, 0.25
      %v366 = vsel %vm85, %v365, -inf
      %367 = vmax.xlane.f32.xlu0 %v366
      %v368 = vpop.xlane.xlu0 %367
      %v369 = vsub.f32 %v365, %v368
      %v370 = vmul.f32 %v369, 1.442695
      %v371 = vpow.pop %v370
      %v372 = vsel %vm85, %v371, 0.0
      %373 = vadd.xlane.f32.xlu0 %v372
      %v374 = vpop.xlane.xlu0 %373
      %v375 = vrcp.pop %v374
      %v376 = vmul.f32 %v374, %v375
      %v377 = vsub.f32 1.0, %v376
      %v378 = vmul.f32 %v375, %v377
      %v379 = vadd.f32 %v375, %v378
      %vm380 = vweird.f32 %v374
      %vm381 = vweird.f32 %v375
      %vm382 = vmor %vm380, %vm381
      %v383 = vsel %vm382, %v375, %v379
      %v384 = vand.u32 2147483647, %v374
      %vm385 = vcmp.eq.f32.partialorder %v384, 8.507059e+37
      %v386 = vand.u32 %v374, 2147483648
      %v387 = vor.u32 1.1754944e-38, %v386
      %v388 = vsel %vm385, %v387, %v383
      %v389 = vmul.f32 %v371, %v388
      %390 = vst.msk [vmem:[#allocation8] sm:$0xff] %vm85, %v389
    $region17: #{tpu_custom_call.1} parent=1 // pred_fallthru
      _
    // Predicated region
    $region18: #{tpu_custom_call.1} parent=1 // pred_check
      _
    $region19: #{tpu_custom_call.1} parent=1 // pred_check_branch
      %392 = sbr.rel (0) target = $region21
    $region20: #{tpu_custom_call.1} parent=1 // pred_region
      %394 = vsyncadd [#allocation7], 0
      %s396 = sshll.u32 [#allocation8], 4
      %s397 = int_to_ptr.vmem [resolvable:$true] %s396
      %s398 = sshll.u32 %s1, 4
      %s399 = int_to_ptr.hbm [resolvable:$true] %s398
      %401 = dma.vmem_to_hbm [thread:$0]  %s397, 128, %s399, [#allocation7]
    $region21: #{tpu_custom_call.1} parent=1 // pred_fallthru
      _
    // Predicated region
    $region22: #{tpu_custom_call.1} parent=1 // pred_check
      _
    $region23: #{tpu_custom_call.1} parent=1 // pred_check_branch
      %403 = sbr.rel (0) target = $region25
    $region24: #{tpu_custom_call.1} parent=1 // pred_region
      %405 = dma.done [#allocation7], 128
    $region25: #{tpu_custom_call.1} parent=1 // pred_fallthru
      _
    %406 = vsyncpa [#allocation6], 1
    %407 = vsyncpa [#allocation7], 1

</llo_original>
